<compile_context>
chip_gen: v7x
topology: tpu7x:2x2x1
jax: 0.10.0
libtpu: 0.0.40
codegen_flags: <defaults>
</compile_context>

<pallas_src>
import math

import jax
import jax.numpy as jnp
from jax.experimental import pallas as pl
from jax.experimental.pallas import tpu as pltpu

# Below this many bytes a Pallas launch is pure overhead vs. a metadata reshape.
_PALLAS_MIN_BYTES = 8192

_LANE = 128
_SUBLANE = 8
# Double-buffered in + out tiles (4 buffers) must stay well under the scoped VMEM
# default on every generation (v7x: 32 MiB default / 64 MiB physical).
_VMEM_TILE_BUDGET_BYTES = 16 * 1024 * 1024


def _copy_kernel(x_ref, o_ref):
    # Straight lane-dense tile copy: unmasked stores, no relayout, no XLU traffic.
    o_ref[...] = x_ref[...]


def _largest_aligned_divisor(dim: int, align: int, cap: int) -> int:
    """Largest divisor of `dim` that is a multiple of `align` and <= cap.

    Falls back to the full extent (always a legal block shape) if none exists.
    """
    if dim <= cap and dim % align == 0:
        return dim
    t = (min(dim, cap) // align) * align
    while t >= align:
        if dim % t == 0:
            return t
        t -= align
    return dim


def _lane_dense_slab(total: int):
    """Factor `total` elements as (rows, cols) with cols a large multiple of 128."""
    for cols in (1024, 512, 256, 128):
        if total % cols == 0:
            return total // cols, cols
    return None


def _plan_tiles(rows: int, cols: int, itemsize: int):
    """Pick (bm, bn) tiles; return None if they would blow the VMEM budget."""
    bm = _largest_aligned_divisor(rows, _SUBLANE, 512)
    bn = _largest_aligned_divisor(cols, _LANE, 1024)
    # 2x double-buffered input + 2x double-buffered (aliased) output tiles.
    if 4 * bm * bn * itemsize > _VMEM_TILE_BUDGET_BYTES:
        return None
    return bm, bn


def _pallas_copy_2d(a2: jax.Array, bm: int, bn: int) -> jax.Array:
    rows, cols = a2.shape
    grid = (rows // bm, cols // bn)

    extra = {}
    if grid[0] > 1 or grid[1] > 1:
        # Only meaningful when there is >1 step to shard (v7x: 2 TensorCores).
        extra["compiler_params"] = pltpu.CompilerParams(
            dimension_semantics=("parallel", "parallel"),
        )

    return pl.pallas_call(
        _copy_kernel,
        out_shape=jax.ShapeDtypeStruct((rows, cols), a2.dtype),
        grid=grid,
        in_specs=[pl.BlockSpec((bm, bn), lambda i, j: (i, j))],
        out_specs=pl.BlockSpec((bm, bn), lambda i, j: (i, j)),
        # Pure copy: alias input buffer to the output so XLA does not allocate
        # and stream a second HBM buffer.
        input_output_aliases={0: 0},
        **extra,
    )(a2)


def view_expand(a: jax.Array, target_shape=(2, 3, 4)) -> jax.Array:
    """a.view(target_shape) for a contiguous input (module spec: (6,4)->(2,3,4))."""
    total = math.prod(a.shape)
    assert total == math.prod(target_shape), "view requires matching element count"

    nbytes = total * jnp.dtype(a.dtype).itemsize
    if nbytes < _PALLAS_MIN_BYTES:
        # The module's actual workload ([6, 4], 96 bytes): metadata-only reshape,
        # no kernel launch.  This is the optimal implementation of .view.
        return jnp.reshape(a, target_shape)

    slab = _lane_dense_slab(total)
    if slab is None:
        # No lane-dense factorization -> a Pallas copy would be masked-store
        # bound; the metadata reshape is still the right answer.
        return jnp.reshape(a, target_shape)
    rows, cols = slab

    plan = _plan_tiles(rows, cols, jnp.dtype(a.dtype).itemsize)
    if plan is None:
        return jnp.reshape(a, target_shape)
    bm, bn = plan

    a2 = jnp.reshape(a, (rows, cols))        # metadata-only on contiguous input
    out2 = _pallas_copy_2d(a2, bm, bn)       # lane-dense aliased copy (fusion stand-in)
    return jnp.reshape(out2, target_shape)   # metadata-only


if __name__ == "__main__":
    key = jax.random.PRNGKey(0)
    k1, k2 = jax.random.split(key)

    # Module spec: [6, 4] float32 -> view(2, 3, 4).  Takes the metadata-only path.
    x = jax.random.normal(k1, (6, 4), dtype=jnp.float32)
    out = view_expand(x, (2, 3, 4))
    jax.block_until_ready(out)

    ref = jnp.reshape(x, (2, 3, 4))
    assert out.shape == ref.shape, (out.shape, ref.shape)
    assert out.dtype == ref.dtype, (out.dtype, ref.dtype)
    assert bool(jnp.array_equal(out, ref)), "mismatch vs jnp.reshape reference (small path)"

    # Exercise the Pallas copy path once (the fusion stand-in for larger shapes):
    # same view semantics on a lane-dense slab.
    y = jax.random.normal(k2, (16, 1024), dtype=jnp.float32)
    out_big = view_expand(y, (2, 8, 1024))
    jax.block_until_ready(out_big)

    ref_big = jnp.reshape(y, (2, 8, 1024))
    assert out_big.shape == ref_big.shape, (out_big.shape, ref_big.shape)
    assert bool(jnp.array_equal(out_big, ref_big)), "mismatch vs jnp.reshape reference (pallas path)"

    print("KERNEL_OK")
</pallas_src>

<mosaic_0001>
module attributes {stable_mosaic.version = 11 : i64} {
  func.func @_copy_kernel(%arg0: i32, %arg1: i32, %arg2: memref<16x1024xf32, #tpu.memory_space<vmem>>, %arg3: memref<16x1024xf32, #tpu.memory_space<vmem>>) attributes {dimension_semantics = [#tpu.dimension_semantics<arbitrary>, #tpu.dimension_semantics<arbitrary>], iteration_bounds = array<i64: 1, 1>, scalar_prefetch = 0 : i64, scratch_operands = 0 : i64, tpu.core_type = #tpu.core_type<tc>, window_params = [{transform_indices = @transform_0, window_bounds = array<i64: 16, 1024>}, {transform_indices = @transform_1, window_bounds = array<i64: 16, 1024>}]} {
    %c0 = arith.constant 0 : index
    %c0_0 = arith.constant 0 : index
    %0 = vector.load %arg2[%c0, %c0_0] : memref<16x1024xf32, #tpu.memory_space<vmem>>, vector<16x1024xf32>
    %c0_1 = arith.constant 0 : index
    %c0_2 = arith.constant 0 : index
    %1 = vector.load %arg3[%c0_1, %c0_2] : memref<16x1024xf32, #tpu.memory_space<vmem>>, vector<16x1024xf32>
    tpu.vector_store %arg3[%c0_1, %c0_2], %0 {strides = array<i32>} : memref<16x1024xf32, #tpu.memory_space<vmem>>, vector<16x1024xf32>,
    return
  }
  func.func @transform_0(%arg0: i32, %arg1: i32) -> (i32, i32) {
    %c0_i32 = arith.constant 0 : i32
    return %arg0, %arg1 : i32, i32
  }
  func.func @transform_1(%arg0: i32, %arg1: i32) -> (i32, i32) {
    %c0_i32 = arith.constant 0 : i32
    return %arg0, %arg1 : i32, i32
  }
}

</mosaic_0001>

<llo_original>
// kernel: tpu_custom_call.1
$region0: #{tpu_custom_call.1}
  #allocation0 [shape = 'u32[]', space=smem, size = 0x4, offset = 0x4, fixed_abs, tag = 'smem constant byte address 0x4 - core index']
  #allocation1 [shape = 'u32[144,128]{1,0:T(1,128)}', space=vmem, size = 0x12000, scoped, tag = 'internal scratch']
  %s0 = inlined_call_operand.hbm [shape: f32[16,1024], index: 0, kind: input, shape index: {}, may-alias: {0,1}]
  %s1 = inlined_call_operand.hbm [shape: f32[16,1024], index: 1, kind: output, shape index: {}, may-alias: {0,1}]
  %s2 = sld [smem:[#allocation0]]
  $region18: #{tpu_custom_call.1} parent=0
    _
  %s4 = ssub.s32 1, %s2
  %s5 = scalar_select 0, %s4, %s2
  $region1: #{tpu_custom_call.1} parent=0
    #allocation2 [shape = 'u8[65536]{0}', space=vmem, size = 0x10000, scoped, tag = 'input window, operand 0, single buffered']
    #allocation3 [shape = 's32[1]{0}', space=sflag, size = 0x4, scoped, tag = 'scoped memory for tpu_custom_call.1']
    #allocation4 [shape = 's32[1]{0}', space=sflag, size = 0x4, scoped, tag = 'scoped memory for tpu_custom_call.1']
    #allocation5 [shape = 'u8[65536]{0}', space=vmem, size = 0x10000, scoped, tag = 'output window, operand 0, single buffered']
    %6 = vsyncpa [#allocation3], 0
    %7 = vsyncpa [#allocation4], 0
    // Predicated region
    $region2: #{tpu_custom_call.1} parent=1 // pred_check
      _
    $region3: #{tpu_custom_call.1} parent=1 // pred_check_branch
      %9 = sbr.rel (0) target = $region5
    $region4: #{tpu_custom_call.1} parent=1 // pred_region
      %s11 = ssub.s32 2048, 2048
      %12 = vsyncadd [#allocation3], %s11
      %s13 = sshll.u32 [#allocation2], 4
      %s14 = int_to_ptr.vmem [resolvable:$true] %s13
      %19 = dma.hbm_to_vmem [thread:$0]  %s0, 2048, %s14, [#allocation3], 1024, 1024, 64
    $region5: #{tpu_custom_call.1} parent=1 // pred_fallthru
      _
    // Predicated region
    $region6: #{tpu_custom_call.1} parent=1 // pred_check
      _
    $region7: #{tpu_custom_call.1} parent=1 // pred_check_branch
      %21 = sbr.rel (0) target = $region9
    $region8: #{tpu_custom_call.1} parent=1 // pred_region
      %22 = dma.done [#allocation3], 2048
    $region9: #{tpu_custom_call.1} parent=1 // pred_fallthru
      _
    %v23 = vld [vmem:[#allocation2] sm:$0xff]
    %v24 = vld [vmem:[#allocation2 + $0x8] sm:$0xff]
    %v25 = vld [vmem:[#allocation2 + $0x10] sm:$0xff]
    %v26 = vld [vmem:[#allocation2 + $0x18] sm:$0xff]
    %v27 = vld [vmem:[#allocation2 + $0x20] sm:$0xff]
    %v28 = vld [vmem:[#allocation2 + $0x28] sm:$0xff]
    %v29 = vld [vmem:[#allocation2 + $0x30] sm:$0xff]
    %v30 = vld [vmem:[#allocation2 + $0x38] sm:$0xff]
    %v31 = vld [vmem:[#allocation2 + $0x40] sm:$0xff]
    %v32 = vld [vmem:[#allocation2 + $0x48] sm:$0xff]
    %v33 = vld [vmem:[#allocation2 + $0x50] sm:$0xff]
    %v34 = vld [vmem:[#allocation2 + $0x58] sm:$0xff]
    %v35 = vld [vmem:[#allocation2 + $0x60] sm:$0xff]
    %v36 = vld [vmem:[#allocation2 + $0x68] sm:$0xff]
    %v37 = vld [vmem:[#allocation2 + $0x70] sm:$0xff]
    %v38 = vld [vmem:[#allocation2 + $0x78] sm:$0xff]
    %39 = vst [vmem:[#allocation5] sm:$0xff] %v23
    %40 = vst [vmem:[#allocation5 + $0x8] sm:$0xff] %v24
    %41 = vst [vmem:[#allocation5 + $0x10] sm:$0xff] %v25
    %42 = vst [vmem:[#allocation5 + $0x18] sm:$0xff] %v26
    %43 = vst [vmem:[#allocation5 + $0x20] sm:$0xff] %v27
    %44 = vst [vmem:[#allocation5 + $0x28] sm:$0xff] %v28
    %45 = vst [vmem:[#allocation5 + $0x30] sm:$0xff] %v29
    %46 = vst [vmem:[#allocation5 + $0x38] sm:$0xff] %v30
    %47 = vst [vmem:[#allocation5 + $0x40] sm:$0xff] %v31
    %48 = vst [vmem:[#allocation5 + $0x48] sm:$0xff] %v32
    %49 = vst [vmem:[#allocation5 + $0x50] sm:$0xff] %v33
    %50 = vst [vmem:[#allocation5 + $0x58] sm:$0xff] %v34
    %51 = vst [vmem:[#allocation5 + $0x60] sm:$0xff] %v35
    %52 = vst [vmem:[#allocation5 + $0x68] sm:$0xff] %v36
    %53 = vst [vmem:[#allocation5 + $0x70] sm:$0xff] %v37
    %54 = vst [vmem:[#allocation5 + $0x78] sm:$0xff] %v38
    // Predicated region
    $region10: #{tpu_custom_call.1} parent=1 // pred_check
      _
    $region11: #{tpu_custom_call.1} parent=1 // pred_check_branch
      %56 = sbr.rel (0) target = $region13
    $region12: #{tpu_custom_call.1} parent=1 // pred_region
      %s58 = ssub.s32 2048, 2048
      %59 = vsyncadd [#allocation4], %s58
      %s60 = sshll.u32 [#allocation5], 4
      %s61 = int_to_ptr.vmem [resolvable:$true] %s60
      %66 = dma.vmem_to_hbm [thread:$0]  %s61, 2048, %s1, [#allocation4], 1024, 1024, 64
    $region13: #{tpu_custom_call.1} parent=1 // pred_fallthru
      _
    // Predicated region
    $region14: #{tpu_custom_call.1} parent=1 // pred_check
      _
    $region15: #{tpu_custom_call.1} parent=1 // pred_check_branch
      %68 = sbr.rel (0) target = $region17
    $region16: #{tpu_custom_call.1} parent=1 // pred_region
      %69 = dma.done [#allocation4], 2048
    $region17: #{tpu_custom_call.1} parent=1 // pred_fallthru
      _
    %70 = vsyncpa [#allocation3], 1
    %71 = vsyncpa [#allocation4], 1

</llo_original>
